<compile_context>
chip_gen: v7x
topology: tpu7x:2x2x1
jax: 0.10.0
libtpu: 0.0.40
codegen_flags: <defaults>
</compile_context>

<pallas_src>
import functools

import jax
import jax.numpy as jnp
from jax.experimental import pallas as pl
from jax.experimental.pallas import tpu as pltpu


HIDDEN = 128
OUT = 6
OUT_PAD = 128          # lane-dense output slab; wrapper slices [:, :OUT]
SUBLANE_BF16 = 16      # bf16 sublane packing
MIN_TILE = 32          # multiple of bf16 sublane tiling; trivially legal block
MAX_TILE = 4096        # keeps tiles comfortably under v7x's 64 MiB VMEM


def _round_up(n, m):
    return ((n + m - 1) // m) * m


def _cdiv(a, b):
    return (a + b - 1) // b


def _has_bf16_valu():
    """True on TPU generations with a bf16 VPU (v6e, v7x); False on v5e/older."""
    try:
        kind = jax.devices()[0].device_kind.lower()
    except Exception:
        return False
    return not any(old in kind for old in ("v2", "v3", "v4", "v5"))


def generator_kernel(x_ref, w1_ref, w2_ref, w3_ref, w4_ref, w5_ref, o_ref,
                     *, bf16_act):
    """Fused 5-layer MLP forward for one batch tile.

    x_ref  : (TB, Kp)    bf16 input tile (latent zero-padded to Kp)
    w1     : (Kp, 128)   bf16
    w2..w4 : (128, 128)  bf16
    w5     : (128, 128)  bf16 (columns 6..127 are zero padding)
    o_ref  : (TB, 128)   bf16 sigmoid outputs (lanes 6..127 hold sigmoid(0))
    """

    def leaky(h):
        # LeakyReLU(0.2) == max(h, 0.2*h) for slope in (0, 1): mul + max only.
        if bf16_act:
            h = h.astype(jnp.bfloat16)                  # bf16 VALU (v6e/v7x)
            return jnp.maximum(h, 0.2 * h)
        return jnp.maximum(h, 0.2 * h).astype(jnp.bfloat16)  # f32 VALU (v5e)

    # bf16 MXU operands, f32 accumulation throughout.
    h = jnp.dot(x_ref[...], w1_ref[...], preferred_element_type=jnp.float32)
    h = leaky(h)
    h = jnp.dot(h, w2_ref[...], preferred_element_type=jnp.float32)
    h = leaky(h)
    h = jnp.dot(h, w3_ref[...], preferred_element_type=jnp.float32)
    h = leaky(h)
    h = jnp.dot(h, w4_ref[...], preferred_element_type=jnp.float32)
    h = leaky(h)

    logits = jnp.dot(h, w5_ref[...], preferred_element_type=jnp.float32)
    # Sigmoid = 1 / (1 + exp(-x)); exp and approx reciprocal both run on the
    # EUP.  Clip guards the small bias of the approx reciprocal so outputs
    # stay strictly inside [0, 1].
    s = pl.reciprocal(1.0 + jnp.exp(-logits), approx=True)
    o_ref[...] = jnp.clip(s, 0.0, 1.0).astype(o_ref.dtype)


def _choose_tile(B, tb):
    """Clamp the requested batch tile and pad the batch to a tile multiple."""
    tb = min(max(MIN_TILE, tb), MAX_TILE)
    tb = _round_up(min(tb, _round_up(B, MIN_TILE)), MIN_TILE)
    # Prefer >= 2 grid steps so the "parallel" batch axis can shard across
    # both v7x TensorCores (harmless on single-TC v5e/v6e).
    if _round_up(B, MIN_TILE) >= 2 * MIN_TILE:
        while tb > MIN_TILE and _cdiv(B, tb) < 2:
            tb = _round_up(tb // 2, MIN_TILE)
    Bp = _round_up(B, tb)
    return tb, Bp


def _build_call(Bp, Kp, tb, bf16_act):
    kernel = functools.partial(generator_kernel, bf16_act=bf16_act)

    w_shapes = ((Kp, HIDDEN), (HIDDEN, HIDDEN), (HIDDEN, HIDDEN),
                (HIDDEN, HIDDEN), (HIDDEN, OUT_PAD))
    in_specs = [pl.BlockSpec((tb, Kp), lambda i: (i, 0))]        # x batch tile
    # Weights: constant index_map -> same block every step, no per-step re-DMA.
    in_specs += [pl.BlockSpec(s, lambda i: (0, 0)) for s in w_shapes]

    weight_elems = Kp * HIDDEN + 3 * HIDDEN * HIDDEN + HIDDEN * OUT_PAD

    # Advisory cost for XLA's scheduler (padded dims).
    flops = 2 * Bp * weight_elems
    bytes_accessed = Bp * Kp * 2 + weight_elems * 2 + Bp * OUT_PAD * 2
    cost = pl.CostEstimate(flops=flops, transcendentals=Bp * OUT_PAD,
                           bytes_accessed=bytes_accessed)

    # Scoped-VMEM budget: double-buffered x/out tiles + resident weights +
    # generous headroom for f32 intermediates.  v5e's scoped default is only
    # 16 MiB; cap at 64 MiB so the same setting is valid on v7x.
    vmem_needed = (2 * tb * Kp * 2              # x tiles (bf16, 2 buffers)
                   + 2 * tb * OUT_PAD * 2       # out tiles (bf16, 2 buffers)
                   + 2 * weight_elems * 2       # weights (bf16, 2 buffers)
                   + 8 * tb * HIDDEN * 4)       # f32 intermediate headroom
    vmem_limit = int(min(64 * 1024 * 1024,
                         max(32 * 1024 * 1024, 2 * vmem_needed)))

    return pl.pallas_call(
        kernel,
        out_shape=jax.ShapeDtypeStruct((Bp, OUT_PAD), jnp.bfloat16),
        grid_spec=pltpu.PrefetchScalarGridSpec(
            num_scalar_prefetch=0,
            grid=(Bp // tb,),
            in_specs=in_specs,
            out_specs=pl.BlockSpec((tb, OUT_PAD), lambda i: (i, 0)),
        ),
        compiler_params=pltpu.CompilerParams(
            dimension_semantics=("parallel",),   # batch tiles shard across TCs
            vmem_limit_bytes=vmem_limit,
        ),
        cost_estimate=cost,
    )


def generator_forward(x, weights, *, tb=1024):
    """Run the fused Generator forward.

    x       : (B, input_size) float32
    weights : tuple of 5 arrays, each in (in_features, out_features) layout
    tb      : target batch tile size.  Sweep 1024-4096 for large batches; the
              wrapper clamps it, pads the batch to a tile multiple, and
              shrinks it for small batches so the grid still has >= 2 steps.
    """
    B, in_size = x.shape
    w1, w2, w3, w4, w5 = weights

    # Pad the latent dim only to the bf16 sublane multiple (not 128): K=32 is
    # fine on the MXU and this keeps input HBM traffic / VMEM minimal.
    Kp = _round_up(in_size, SUBLANE_BF16)
    tb_eff, Bp = _choose_tile(B, tb)

    xp = jnp.pad(x, ((0, Bp - B), (0, Kp - in_size))).astype(jnp.bfloat16)
    w1p = jnp.pad(w1, ((0, Kp - in_size), (0, 0))).astype(jnp.bfloat16)
    w2b, w3b, w4b = (w.astype(jnp.bfloat16) for w in (w2, w3, w4))
    # Lane-dense output: pad w5 to (128, 128) so stores are full-lane vst;
    # the extra lanes compute sigmoid(0)=0.5 and are sliced off below.
    w5p = jnp.pad(w5, ((0, 0), (0, OUT_PAD - OUT))).astype(jnp.bfloat16)

    out = _build_call(Bp, Kp, tb_eff, _has_bf16_valu())(
        xp, w1p, w2b, w3b, w4b, w5p)
    return out[:B, :OUT].astype(jnp.float32)


def init_weights(key, input_size):
    """Deterministic weight init, (in, out) layout (transposed vs. PyTorch)."""
    ks = jax.random.split(key, 5)
    shapes = [
        (input_size, HIDDEN),
        (HIDDEN, HIDDEN),
        (HIDDEN, HIDDEN),
        (HIDDEN, HIDDEN),
        (HIDDEN, OUT),
    ]
    ws = []
    for k, (fan_in, fan_out) in zip(ks, shapes):
        bound = 1.0 / jnp.sqrt(jnp.float32(fan_in))  # nn.Linear default scale
        ws.append(jax.random.uniform(k, (fan_in, fan_out), jnp.float32, -bound, bound))
    return tuple(ws)


def reference_forward(x, weights):
    """Pure-JAX f32 reference (PyTorch forward semantics)."""
    w1, w2, w3, w4, w5 = weights
    h = jax.nn.leaky_relu(x @ w1, 0.2)
    h = jax.nn.leaky_relu(h @ w2, 0.2)
    h = jax.nn.leaky_relu(h @ w3, 0.2)
    h = jax.nn.leaky_relu(h @ w4, 0.2)
    return jax.nn.sigmoid(h @ w5)


if __name__ == "__main__":
    key = jax.random.PRNGKey(0)
    k_x, k_w = jax.random.split(key)

    input_size = 32   # latent dim fed to the Generator
    batch = 64        # small demo batch; tile shrinks to 32 -> 2-step grid

    x = jax.random.normal(k_x, (batch, input_size), jnp.float32)
    weights = init_weights(k_w, input_size)

    out = generator_forward(x, weights)
    out = jax.block_until_ready(out)

    ref = reference_forward(x, weights)
    assert out.shape == (batch, OUT)
    # bf16 matmul operands / activations + bf16 output + approx reciprocal
    # compound over 5 layers => loosened tolerance vs the f32 reference
    # (acceptable for a GAN generator).
    assert jnp.allclose(out, ref, atol=3e-2), "mismatch vs. pure-JAX reference"

    print("KERNEL_OK")
</pallas_src>

<mosaic_0001>
module attributes {stable_mosaic.version = 11 : i64} {
  func.func @generator_kernel(%arg0: i32, %arg1: memref<32x32xbf16, #tpu.memory_space<vmem>>, %arg2: memref<32x128xbf16, #tpu.memory_space<vmem>>, %arg3: memref<128x128xbf16, #tpu.memory_space<vmem>>, %arg4: memref<128x128xbf16, #tpu.memory_space<vmem>>, %arg5: memref<128x128xbf16, #tpu.memory_space<vmem>>, %arg6: memref<128x128xbf16, #tpu.memory_space<vmem>>, %arg7: memref<32x128xbf16, #tpu.memory_space<vmem>>) attributes {dimension_semantics = [#tpu.dimension_semantics<parallel>], iteration_bounds = array<i64: 2>, scalar_prefetch = 0 : i64, scratch_operands = 0 : i64, tpu.core_type = #tpu.core_type<tc>, window_params = [{transform_indices = @transform_0, window_bounds = array<i64: 32, 32>}, {pipeline_mode = #tpu.pipeline_mode<synchronous>, transform_indices = @transform_1, window_bounds = array<i64: 32, 128>}, {pipeline_mode = #tpu.pipeline_mode<synchronous>, transform_indices = @transform_2, window_bounds = array<i64: 128, 128>}, {pipeline_mode = #tpu.pipeline_mode<synchronous>, transform_indices = @transform_3, window_bounds = array<i64: 128, 128>}, {pipeline_mode = #tpu.pipeline_mode<synchronous>, transform_indices = @transform_4, window_bounds = array<i64: 128, 128>}, {pipeline_mode = #tpu.pipeline_mode<synchronous>, transform_indices = @transform_5, window_bounds = array<i64: 128, 128>}, {transform_indices = @transform_6, window_bounds = array<i64: 32, 128>}]} {
    %c0 = arith.constant 0 : index
    %c0_0 = arith.constant 0 : index
    %0 = vector.load %arg1[%c0, %c0_0] : memref<32x32xbf16, #tpu.memory_space<vmem>>, vector<32x32xbf16>
    %c0_1 = arith.constant 0 : index
    %c0_2 = arith.constant 0 : index
    %1 = vector.load %arg2[%c0_1, %c0_2] : memref<32x128xbf16, #tpu.memory_space<vmem>>, vector<32x128xbf16>
    %cst = arith.constant dense<0.000000e+00> : vector<32x128xf32>
    %2 = tpu.matmul %0, %1, %cst {dimension_numbers = #tpu.dot_dimension_numbers<[1], [0], [0], [1], [0, 0, 1, 1], [], []>} : vector<32x32xbf16>, vector<32x128xbf16>, vector<32x128xf32> -> vector<32x128xf32>
    %3 = arith.truncf %2 : vector<32x128xf32> to vector<32x128xbf16>
    %cst_3 = arith.constant 2.001950e-01 : bf16
    %4 = vector.broadcast %cst_3 : bf16 to vector<32x128xbf16>
    %5 = arith.mulf %4, %3 : vector<32x128xbf16>
    %6 = arith.maximumf %3, %5 : vector<32x128xbf16>
    %c0_4 = arith.constant 0 : index
    %c0_5 = arith.constant 0 : index
    %7 = vector.load %arg3[%c0_4, %c0_5] : memref<128x128xbf16, #tpu.memory_space<vmem>>, vector<128x128xbf16>
    %cst_6 = arith.constant dense<0.000000e+00> : vector<32x128xf32>
    %8 = tpu.matmul %6, %7, %cst_6 {dimension_numbers = #tpu.dot_dimension_numbers<[1], [0], [0], [1], [0, 0, 1, 1], [], []>} : vector<32x128xbf16>, vector<128x128xbf16>, vector<32x128xf32> -> vector<32x128xf32>
    %9 = arith.truncf %8 : vector<32x128xf32> to vector<32x128xbf16>
    %cst_7 = arith.constant 2.001950e-01 : bf16
    %10 = vector.broadcast %cst_7 : bf16 to vector<32x128xbf16>
    %11 = arith.mulf %10, %9 : vector<32x128xbf16>
    %12 = arith.maximumf %9, %11 : vector<32x128xbf16>
    %c0_8 = arith.constant 0 : index
    %c0_9 = arith.constant 0 : index
    %13 = vector.load %arg4[%c0_8, %c0_9] : memref<128x128xbf16, #tpu.memory_space<vmem>>, vector<128x128xbf16>
    %cst_10 = arith.constant dense<0.000000e+00> : vector<32x128xf32>
    %14 = tpu.matmul %12, %13, %cst_10 {dimension_numbers = #tpu.dot_dimension_numbers<[1], [0], [0], [1], [0, 0, 1, 1], [], []>} : vector<32x128xbf16>, vector<128x128xbf16>, vector<32x128xf32> -> vector<32x128xf32>
    %15 = arith.truncf %14 : vector<32x128xf32> to vector<32x128xbf16>
    %cst_11 = arith.constant 2.001950e-01 : bf16
    %16 = vector.broadcast %cst_11 : bf16 to vector<32x128xbf16>
    %17 = arith.mulf %16, %15 : vector<32x128xbf16>
    %18 = arith.maximumf %15, %17 : vector<32x128xbf16>
    %c0_12 = arith.constant 0 : index
    %c0_13 = arith.constant 0 : index
    %19 = vector.load %arg5[%c0_12, %c0_13] : memref<128x128xbf16, #tpu.memory_space<vmem>>, vector<128x128xbf16>
    %cst_14 = arith.constant dense<0.000000e+00> : vector<32x128xf32>
    %20 = tpu.matmul %18, %19, %cst_14 {dimension_numbers = #tpu.dot_dimension_numbers<[1], [0], [0], [1], [0, 0, 1, 1], [], []>} : vector<32x128xbf16>, vector<128x128xbf16>, vector<32x128xf32> -> vector<32x128xf32>
    %21 = arith.truncf %20 : vector<32x128xf32> to vector<32x128xbf16>
    %cst_15 = arith.constant 2.001950e-01 : bf16
    %22 = vector.broadcast %cst_15 : bf16 to vector<32x128xbf16>
    %23 = arith.mulf %22, %21 : vector<32x128xbf16>
    %24 = arith.maximumf %21, %23 : vector<32x128xbf16>
    %c0_16 = arith.constant 0 : index
    %c0_17 = arith.constant 0 : index
    %25 = vector.load %arg6[%c0_16, %c0_17] : memref<128x128xbf16, #tpu.memory_space<vmem>>, vector<128x128xbf16>
    %cst_18 = arith.constant dense<0.000000e+00> : vector<32x128xf32>
    %26 = tpu.matmul %24, %25, %cst_18 {dimension_numbers = #tpu.dot_dimension_numbers<[1], [0], [0], [1], [0, 0, 1, 1], [], []>} : vector<32x128xbf16>, vector<128x128xbf16>, vector<32x128xf32> -> vector<32x128xf32>
    %cst_19 = arith.constant 0.000000e+00 : f32
    %27 = vector.broadcast %cst_19 : f32 to vector<32x128xf32>
    %28 = arith.subf %27, %26 : vector<32x128xf32>
    %29 = math.exp %28 : vector<32x128xf32>
    %cst_20 = arith.constant 1.000000e+00 : f32
    %30 = vector.broadcast %cst_20 : f32 to vector<32x128xf32>
    %31 = arith.addf %30, %29 : vector<32x128xf32>
    %32 = tpu.reciprocal %31 {approx = true} : vector<32x128xf32> -> vector<32x128xf32>
    %cst_21 = arith.constant 0.000000e+00 : f32
    %cst_22 = arith.constant 1.000000e+00 : f32
    %33 = vector.broadcast %cst_21 : f32 to vector<32x128xf32>
    %34 = arith.maximumf %33, %32 : vector<32x128xf32>
    %35 = vector.broadcast %cst_22 : f32 to vector<32x128xf32>
    %36 = arith.minimumf %35, %34 : vector<32x128xf32>
    %37 = arith.truncf %36 : vector<32x128xf32> to vector<32x128xbf16>
    %c0_23 = arith.constant 0 : index
    %c0_24 = arith.constant 0 : index
    %38 = vector.load %arg7[%c0_23, %c0_24] : memref<32x128xbf16, #tpu.memory_space<vmem>>, vector<32x128xbf16>
    tpu.vector_store %arg7[%c0_23, %c0_24], %37 {strides = array<i32>} : memref<32x128xbf16, #tpu.memory_space<vmem>>, vector<32x128xbf16>,
    return
  }
  func.func @transform_0(%arg0: i32) -> (i32, i32) {
    %c0_i32 = arith.constant 0 : i32
    %c0_i32_0 = arith.constant 0 : i32
    return %arg0, %c0_i32 : i32, i32
  }
  func.func @transform_1(%arg0: i32) -> (i32, i32) {
    %c0_i32 = arith.constant 0 : i32
    %c0_i32_0 = arith.constant 0 : i32
    %c0_i32_1 = arith.constant 0 : i32
    return %c0_i32, %c0_i32_0 : i32, i32
  }
  func.func @transform_2(%arg0: i32) -> (i32, i32) {
    %c0_i32 = arith.constant 0 : i32
    %c0_i32_0 = arith.constant 0 : i32
    %c0_i32_1 = arith.constant 0 : i32
    return %c0_i32, %c0_i32_0 : i32, i32
  }
  func.func @transform_3(%arg0: i32) -> (i32, i32) {
    %c0_i32 = arith.constant 0 : i32
    %c0_i32_0 = arith.constant 0 : i32
    %c0_i32_1 = arith.constant 0 : i32
    return %c0_i32, %c0_i32_0 : i32, i32
  }
  func.func @transform_4(%arg0: i32) -> (i32, i32) {
    %c0_i32 = arith.constant 0 : i32
    %c0_i32_0 = arith.constant 0 : i32
    %c0_i32_1 = arith.constant 0 : i32
    return %c0_i32, %c0_i32_0 : i32, i32
  }
  func.func @transform_5(%arg0: i32) -> (i32, i32) {
    %c0_i32 = arith.constant 0 : i32
    %c0_i32_0 = arith.constant 0 : i32
    %c0_i32_1 = arith.constant 0 : i32
    return %c0_i32, %c0_i32_0 : i32, i32
  }
  func.func @transform_6(%arg0: i32) -> (i32, i32) {
    %c0_i32 = arith.constant 0 : i32
    %c0_i32_0 = arith.constant 0 : i32
    return %arg0, %c0_i32 : i32, i32
  }
}

</mosaic_0001>

<llo_original>
// kernel: tpu_custom_call.1
$region0: #{tpu_custom_call.1}
  #allocation0 [shape = 'u32[]', space=smem, size = 0x4, offset = 0x4, fixed_abs, tag = 'smem constant byte address 0x4 - core index']
  #allocation1 [shape = 'u32[144,128]{1,0:T(1,128)}', space=vmem, size = 0x12000, scoped, tag = 'internal scratch']
  %s0 = inlined_call_operand.vmem [shape: bf16[64,32], index: 0, kind: input, shape index: {}]
  %s1 = inlined_call_operand.hbm [shape: bf16[32,128], index: 1, kind: input, shape index: {}]
  %s2 = inlined_call_operand.hbm [shape: bf16[128,128], index: 2, kind: input, shape index: {}]
  %s3 = inlined_call_operand.hbm [shape: bf16[128,128], index: 3, kind: input, shape index: {}]
  %s4 = inlined_call_operand.hbm [shape: bf16[128,128], index: 4, kind: input, shape index: {}]
  %s5 = inlined_call_operand.vmem [shape: bf16[128,128], index: 5, kind: input, shape index: {}]
  %s6 = inlined_call_operand.hbm [shape: bf16[64,128], index: 6, kind: output, shape index: {}]
  %s7 = sld [smem:[#allocation0]]
  $region73: #{tpu_custom_call.1} parent=0
    _
  %s9 = ssub.s32 1, %s7
  %s10 = scalar_select 0, %s9, %s7
  $region1: #{tpu_custom_call.1} parent=0
    #allocation2 [shape = 'u8[8192]{0}', space=vmem, size = 0x2000, scoped, tag = 'input window, operand 1, single buffered']
    #allocation3 [shape = 's32[2]{0}', space=sflag, size = 0x8, scoped, tag = 'scoped memory for tpu_custom_call.1']
    #allocation4 [shape = 's32[2]{0}', space=sflag, size = 0x8, scoped, tag = 'scoped memory for tpu_custom_call.1']
    #allocation5 [shape = 'u8[32768]{0}', space=vmem, size = 0x8000, scoped, tag = 'input window, operand 2, single buffered']
    #allocation6 [shape = 's32[1]{0}', space=sflag, size = 0x4, scoped, tag = 'scoped memory for tpu_custom_call.1']
    #allocation7 [shape = 'u8[32768]{0}', space=vmem, size = 0x8000, scoped, tag = 'input window, operand 3, single buffered']
    #allocation8 [shape = 'u8[32768]{0}', space=vmem, size = 0x8000, scoped, tag = 'input window, operand 4, single buffered']
    #allocation9 [shape = 's32[1]{0}', space=sflag, size = 0x4, scoped, tag = 'scoped memory for tpu_custom_call.1']
    #allocation10 [shape = 'u8[16384]{0}', space=vmem, size = 0x4000, scoped, tag = 'output window, operand 0']
    %11 = vsyncpa [#allocation3], 0
    %12 = vsyncpa [#allocation6], 0
    %13 = vsyncpa [#allocation9], 0
    %14 = vsyncpa [#allocation4], 0
    %s15 = scalar_lea.sflag [#allocation4], 1
    %16 = vsyncpa %s15, 0
    loop: start=0, step=1, limit=4
    $region2: #{tpu_custom_call.1} parent=1 // loop_pre_header
      _
    $region3: #{tpu_custom_call.1} parent=1 // loop_header
      %s18 = sphi 0, %s22
      %p19 = scmp.ge.s32.totalorder %s18, 4
      %s28 = sphi 0, %s30
      %s31 = sphi 0, %s28
      %s32 = sphi 0, %s31
      %s48 = sphi 0, %s32
      %s52 = sphi 0, %s52
      %s54 = sphi 0, %s52
      %s55 = sphi 0, %s54
      %s69 = sphi 0, %s55
      %s73 = sphi 0, %s73
      %s75 = sphi 0, %s73
      %s76 = sphi 0, %s75
      %s90 = sphi 0, %s76
      %s94 = sphi 0, %s94
      %s96 = sphi 0, %s94
      %s97 = sphi 0, %s96
      %s111 = sphi 0, %s97
      %s115 = sphi 0, %s115
      %s117 = sphi 0, %s115
      %s118 = sphi 0, %s117
      %s132 = sphi 0, %s118
      %s136 = sphi 0, %s136
      %s138 = sphi 0, %s136
      %s139 = sphi 0, %s138
      %s153 = sphi 0, %s139
      %s159 = sphi 0, %s161
      %s162 = sphi 0, %s159
      %s163 = sphi 0, %s162
      %s179 = sphi 0, %s163
    $region4: #{tpu_custom_call.1} parent=1 // loop_header_branch
      %21 = sbr.rel (%p19) target = $region8
    $region5: #{tpu_custom_call.1} parent=1 // loop_body
      %s23 = ssub.s32 %s18, 1
      %s24 = ssub.s32 %s18, 2
      %s25 = sadd.s32 %s18, 1
      %s26 = ssub.s32 %s18, %s25
      %p27 = scmp.eq.s32.totalorder %s26, 0
      %s29 = sadd.s32 %s28, 1
      %s30 = scalar_select %p27, %s28, %s29
      %p33 = pneg %p27
      %p34 = scmp.eq.s32.totalorder %s18, 1
      %p35 = por %p33, %p34
      %p36 = scmp.ne.s32.totalorder %s28, %s31
      %p37 = scmp.eq.s32.totalorder %s18, 0
      %p38 = por %p36, %p37
      %p39 = scmp.ne.s32.totalorder %s28, %s31
      %p40 = scmp.eq.s32.totalorder %s23, 1
      %p41 = por %p39, %p40
      %p42 = scmp.ne.s32.totalorder %s31, %s32
      %p43 = scmp.eq.s32.totalorder %s23, 0
      %p44 = por %p42, %p43
      %p45 = scmp.ne.s32.totalorder %s31, %s32
      %p46 = scmp.eq.s32.totalorder %s24, 1
      %p47 = por %p45, %p46
      %p49 = scmp.ne.s32.totalorder %s32, %s48
      %p50 = scmp.eq.s32.totalorder %s24, 0
      %p51 = por %p49, %p50
      %s53 = sadd.s32 %s52, 1
      %p56 = scmp.eq.s32.totalorder %s18, 1
      %p57 = scmp.ne.s32.totalorder %s52, %s54
      %p58 = scmp.eq.s32.totalorder %s18, 0
      %p59 = por %p57, %p58
      %p60 = scmp.ne.s32.totalorder %s52, %s54
      %p61 = scmp.eq.s32.totalorder %s23, 1
      %p62 = por %p60, %p61
      %p63 = scmp.ne.s32.totalorder %s54, %s55
      %p64 = scmp.eq.s32.totalorder %s23, 0
      %p65 = por %p63, %p64
      %p66 = scmp.ne.s32.totalorder %s54, %s55
      %p67 = scmp.eq.s32.totalorder %s24, 1
      %p68 = por %p66, %p67
      %p70 = scmp.ne.s32.totalorder %s55, %s69
      %p71 = scmp.eq.s32.totalorder %s24, 0
      %p72 = por %p70, %p71
      %s74 = sadd.s32 %s73, 1
      %p77 = scmp.eq.s32.totalorder %s18, 1
      %p78 = scmp.ne.s32.totalorder %s73, %s75
      %p79 = scmp.eq.s32.totalorder %s18, 0
      %p80 = por %p78, %p79
      %p81 = scmp.ne.s32.totalorder %s73, %s75
      %p82 = scmp.eq.s32.totalorder %s23, 1
      %p83 = por %p81, %p82
      %p84 = scmp.ne.s32.totalorder %s75, %s76
      %p85 = scmp.eq.s32.totalorder %s23, 0
      %p86 = por %p84, %p85
      %p87 = scmp.ne.s32.totalorder %s75, %s76
      %p88 = scmp.eq.s32.totalorder %s24, 1
      %p89 = por %p87, %p88
      %p91 = scmp.ne.s32.totalorder %s76, %s90
      %p92 = scmp.eq.s32.totalorder %s24, 0
      %p93 = por %p91, %p92
      %s95 = sadd.s32 %s94, 1
      %p98 = scmp.eq.s32.totalorder %s18, 1
      %p99 = scmp.ne.s32.totalorder %s94, %s96
      %p100 = scmp.eq.s32.totalorder %s18, 0
      %p101 = por %p99, %p100
      %p102 = scmp.ne.s32.totalorder %s94, %s96
      %p103 = scmp.eq.s32.totalorder %s23, 1
      %p104 = por %p102, %p103
      %p105 = scmp.ne.s32.totalorder %s96, %s97
      %p106 = scmp.eq.s32.totalorder %s23, 0
      %p107 = por %p105, %p106
      %p108 = scmp.ne.s32.totalorder %s96, %s97
      %p109 = scmp.eq.s32.totalorder %s24, 1
      %p110 = por %p108, %p109
      %p112 = scmp.ne.s32.totalorder %s97, %s111
      %p113 = scmp.eq.s32.totalorder %s24, 0
      %p114 = por %p112, %p113
      %s116 = sadd.s32 %s115, 1
      %p119 = scmp.eq.s32.totalorder %s18, 1
      %p120 = scmp.ne.s32.totalorder %s115, %s117
      %p121 = scmp.eq.s32.totalorder %s18, 0
      %p122 = por %p120, %p121
      %p123 = scmp.ne.s32.totalorder %s115, %s117
      %p124 = scmp.eq.s32.totalorder %s23, 1
      %p125 = por %p123, %p124
      %p126 = scmp.ne.s32.totalorder %s117, %s118
      %p127 = scmp.eq.s32.totalorder %s23, 0
      %p128 = por %p126, %p127
      %p129 = scmp.ne.s32.totalorder %s117, %s118
      %p130 = scmp.eq.s32.totalorder %s24, 1
      %p131 = por %p129, %p130
      %p133 = scmp.ne.s32.totalorder %s118, %s132
      %p134 = scmp.eq.s32.totalorder %s24, 0
      %p135 = por %p133, %p134
      %s137 = sadd.s32 %s136, 1
      %p140 = scmp.eq.s32.totalorder %s18, 1
      %p141 = scmp.ne.s32.totalorder %s136, %s138
      %p142 = scmp.eq.s32.totalorder %s18, 0
      %p143 = por %p141, %p142
      %p144 = scmp.ne.s32.totalorder %s136, %s138
      %p145 = scmp.eq.s32.totalorder %s23, 1
      %p146 = por %p144, %p145
      %p147 = scmp.ne.s32.totalorder %s138, %s139
      %p148 = scmp.eq.s32.totalorder %s23, 0
      %p149 = por %p147, %p148
      %p150 = scmp.ne.s32.totalorder %s138, %s139
      %p151 = scmp.eq.s32.totalorder %s24, 1
      %p152 = por %p150, %p151
      %p154 = scmp.ne.s32.totalorder %s139, %s153
      %p155 = scmp.eq.s32.totalorder %s24, 0
      %p156 = por %p154, %p155
      %s157 = ssub.s32 %s18, %s25
      %p158 = scmp.eq.s32.totalorder %s157, 0
      %s160 = sadd.s32 %s159, 1
      %s161 = scalar_select %p158, %s159, %s160
      %p164 = pneg %p158
      %p165 = scmp.eq.s32.totalorder %s18, 1
      %p166 = por %p164, %p165
      %p167 = scmp.ne.s32.totalorder %s159, %s162
      %p168 = scmp.eq.s32.totalorder %s18, 0
      %p169 = por %p167, %p168
      %p170 = scmp.ne.s32.totalorder %s159, %s162
      %p171 = scmp.eq.s32.totalorder %s23, 1
      %p172 = por %p170, %p171
      %p173 = scmp.ne.s32.totalorder %s162, %s163
      %p174 = scmp.eq.s32.totalorder %s23, 0
      %p175 = por %p173, %p174
      %p176 = scmp.ne.s32.totalorder %s162, %s163
      %p177 = scmp.eq.s32.totalorder %s24, 1
      %p178 = por %p176, %p177
      %p180 = scmp.ne.s32.totalorder %s163, %s179
      %p181 = scmp.eq.s32.totalorder %s24, 0
      %p182 = por %p180, %p181
      %p183 = scmp.le.s32.totalorder 1, %s18
      %p184 = scmp.lt.s32.totalorder %s18, 3
      %p185 = pnand %p183, %p184
      %p186 = pneg %p185
      // Predicated region
      $region9: #{tpu_custom_call.1} parent=5 // pred_check
        _
      $region10: #{tpu_custom_call.1} parent=5 // pred_check_branch
        %188 = sbr.rel (%p185) target = $region12
      $region11: #{tpu_custom_call.1} parent=5 // pred_region
        %s189 = ssub.s32 %s18, 1
        // Predicated region
        $region13: #{tpu_custom_call.1} parent=11 // pred_check
          %p190 = pneg %p65
        $region14: #{tpu_custom_call.1} parent=11 // pred_check_branch
          %192 = sbr.rel (%p190) target = $region16
        $region15: #{tpu_custom_call.1} parent=11 // pred_region
          %s194 = ssub.s32 256, 256
          %195 = vsyncadd [#allocation3], %s194
          %s196 = sshll.u32 [#allocation2], 4
          %s197 = int_to_ptr.vmem [resolvable:$true] %s196
          %202 = dma.hbm_to_vmem [thread:$0]  %s1, 256, %s197, [#allocation3], 64, 64, 4
        $region16: #{tpu_custom_call.1} parent=11 // pred_fallthru
          _
        // Predicated region
        $region17: #{tpu_custom_call.1} parent=11 // pred_check
          %p203 = pneg %p86
        $region18: #{tpu_custom_call.1} parent=11 // pred_check_branch
          %205 = sbr.rel (%p203) target = $region20
        $region19: #{tpu_custom_call.1} parent=11 // pred_region
          %s207 = ssub.s32 1024, 1024
          %208 = vsyncadd [#allocation6], %s207
          %s209 = sshll.u32 [#allocation5], 4
          %s210 = int_to_ptr.vmem [resolvable:$true] %s209
          %215 = dma.hbm_to_vmem [thread:$0]  %s2, 1024, %s210, [#allocation6], 64, 64, 4
        $region20: #{tpu_custom_call.1} parent=11 // pred_fallthru
          _
        // Predicated region
        $region21: #{tpu_custom_call.1} parent=11 // pred_check
          %p216 = pneg %p107
        $region22: #{tpu_custom_call.1} parent=11 // pred_check_branch
          %218 = sbr.rel (%p216) target = $region24
        $region23: #{tpu_custom_call.1} parent=11 // pred_region
          %s220 = ssub.s32 1024, 1024
          %221 = vsyncadd [#allocation6], %s220
          %s222 = sshll.u32 [#allocation7], 4
          %s223 = int_to_ptr.vmem [resolvable:$true] %s222
          %228 = dma.hbm_to_vmem [thread:$0]  %s3, 1024, %s223, [#allocation6], 64, 64, 4
        $region24: #{tpu_custom_call.1} parent=11 // pred_fallthru
          _
        // Predicated region
        $region25: #{tpu_custom_call.1} parent=11 // pred_check
          %p229 = pneg %p128
        $region26: #{tpu_custom_call.1} parent=11 // pred_check_branch
          %231 = sbr.rel (%p229) target = $region28
        $region27: #{tpu_custom_call.1} parent=11 // pred_region
          %s233 = ssub.s32 1024, 1024
          %234 = vsyncadd [#allocation9], %s233
          %s235 = sshll.u32 [#allocation8], 4
          %s236 = int_to_ptr.vmem [resolvable:$true] %s235
          %241 = dma.hbm_to_vmem [thread:$0]  %s4, 1024, %s236, [#allocation9], 64, 64, 4
        $region28: #{tpu_custom_call.1} parent=11 // pred_fallthru
          _
        // Predicated region
        $region29: #{tpu_custom_call.1} parent=11 // pred_check
          %p242 = pneg %p149
        $region30: #{tpu_custom_call.1} parent=11 // pred_check_branch
          %244 = sbr.rel (%p242) target = $region32
        $region31: #{tpu_custom_call.1} parent=11 // pred_region
          _
        $region32: #{tpu_custom_call.1} parent=11 // pred_fallthru
          _
      $region12: #{tpu_custom_call.1} parent=5 // pred_fallthru
        _
      %p245 = scmp.lt.s32.totalorder %s18, 2
      // Predicated region
      $region33: #{tpu_custom_call.1} parent=5 // pred_check
        %p246 = pneg %p245
      $region34: #{tpu_custom_call.1} parent=5 // pred_check_branch
        %248 = sbr.rel (%p246) target = $region36
      $region35: #{tpu_custom_call.1} parent=5 // pred_region
        // Predicated region
        $region37: #{tpu_custom_call.1} parent=35 // pred_check
          %p249 = pneg %p38
        $region38: #{tpu_custom_call.1} parent=35 // pred_check_branch
          %251 = sbr.rel (%p249) target = $region40
        $region39: #{tpu_custom_call.1} parent=35 // pred_region
          %s252 = smul.u32 4, %s18
          %p253 = scmp.lt.s32.totalorder %s252, 7
          %s254 = scalar_select %p253, %s252, 7
          %s255 = smul.addr %s254, 4
          %s256 = scalar_lea.vmem %s0, %s255
          %s257 = smul.u32 4, %s18
        $region40: #{tpu_custom_call.1} parent=35 // pred_fallthru
          _
      $region36: #{tpu_custom_call.1} parent=5 // pred_fallthru
        _
      %p258 = scmp.le.s32.totalorder 1, %s18
      %p259 = scmp.lt.s32.totalorder %s18, 3
      %p260 = pnand %p258, %p259
      %p261 = pneg %p260
      // Predicated region
      $region41: #{tpu_custom_call.1} parent=5 // pred_check
        _
      $region42: #{tpu_custom_call.1} parent=5 // pred_check_branch
        %263 = sbr.rel (%p260) target = $region44
      $region43: #{tpu_custom_call.1} parent=5 // pred_region
        %s264 = ssub.s32 %s18, 1
        // Predicated region
        $region45: #{tpu_custom_call.1} parent=43 // pred_check
          %p265 = pneg %p65
        $region46: #{tpu_custom_call.1} parent=43 // pred_check_branch
          %267 = sbr.rel (%p265) target = $region48
        $region47: #{tpu_custom_call.1} parent=43 // pred_region
          %268 = dma.done [#allocation3], 256
        $region48: #{tpu_custom_call.1} parent=43 // pred_fallthru
          _
        // Predicated region
        $region49: #{tpu_custom_call.1} parent=43 // pred_check
          %p269 = pneg %p86
        $region50: #{tpu_custom_call.1} parent=43 // pred_check_branch
          %271 = sbr.rel (%p269) target = $region52
        $region51: #{tpu_custom_call.1} parent=43 // pred_region
          %272 = dma.done [#allocation6], 1024
        $region52: #{tpu_custom_call.1} parent=43 // pred_fallthru
          _
        // Predicated region
        $region53: #{tpu_custom_call.1} parent=43 // pred_check
          %p273 = pneg %p107
        $region54: #{tpu_custom_call.1} parent=43 // pred_check_branch
          %275 = sbr.rel (%p273) target = $region56
        $region55: #{tpu_custom_call.1} parent=43 // pred_region
          %276 = dma.done [#allocation6], 1024
        $region56: #{tpu_custom_call.1} parent=43 // pred_fallthru
          _
        // Predicated region
        $region57: #{tpu_custom_call.1} parent=43 // pred_check
          %p277 = pneg %p128
        $region58: #{tpu_custom_call.1} parent=43 // pred_check_branch
          %279 = sbr.rel (%p277) target = $region60
        $region59: #{tpu_custom_call.1} parent=43 // pred_region
          %280 = dma.done [#allocation9], 1024
        $region60: #{tpu_custom_call.1} parent=43 // pred_fallthru
          _
        %s281 = smul.u32 4, %s23
        %p282 = scmp.lt.s32.totalorder %s281, 7
        %s283 = scalar_select %p282, %s281, 7
        %s284 = smul.addr %s283, 4
        %s285 = scalar_lea.vmem %s0, %s284
        %p286 = pneg %p44
        %p287 = pneg %p41
        %p288 = pneg %p65
        %p289 = pneg %p62
        %p290 = pneg %p86
        %p291 = pneg %p83
        %p292 = pneg %p107
        %p293 = pneg %p104
        %p294 = pneg %p128
        %p295 = pneg %p125
        %p296 = pneg %p149
        %p297 = pneg %p146
        %p298 = pneg %p175
        %p299 = pneg %p172
        %s300 = sand.u32 %s162, 1
        %s301 = scalar_lea.sflag [#allocation4], %s300
        %s302 = sand.u32 %s162, 1
        %s303 = smul.addr %s302, 16
        %s304 = scalar_lea.vmem [#allocation10], %s303
        %s305 = smul.u32 4, %s23
        %p306 = scmp.lt.s32.totalorder %s305, 7
        %s307 = scalar_select %p306, %s305, 7
        %s308 = smul.addr %s307, 4
        %s309 = scalar_lea.vmem %s0, %s308
        %s310 = smul.u32 4, %s23
        %s311 = smul.u32 4, %s23
        %v314 = vld [vmem:[%s309] sm:$0xf]
        %v315 = vld [vmem:[%s309 + $0x4] sm:$0xf]
        %v316 = vld [vmem:[%s309 + $0x8] sm:$0xf]
        %v317 = vld [vmem:[%s309 + $0xc] sm:$0xf]
        %v318 = vld [vmem:[#allocation2] sm:$0xf]
        %v319 = vld [vmem:[#allocation2 + $0x4] sm:$0xf]
        %v320 = vld [vmem:[#allocation2 + $0x8] sm:$0xf]
        %v321 = vld [vmem:[#allocation2 + $0xc] sm:$0xf]
        %v326 = vunpack.c.l.b16 %v314
        %v327 = vunpack.c.l.b16 %v315
        %v328 = vunpack.c.l.b16 %v316
        %v329 = vunpack.c.l.b16 %v317
        %v330 = vpack.c.b16 %v327, %v326
        %v331 = vpack.c.b16 %v329, %v328
        %v336 = vunpack.c.l.b16 %v318
        %v337 = vunpack.c.l.b16 %v319
        %v338 = vunpack.c.l.b16 %v320
        %v339 = vunpack.c.l.b16 %v321
        %v340 = vpack.c.b16 %v337, %v336
        %v341 = vpack.c.b16 %v339, %v338
        %vm344 = vcmask 261120
        %v346 = vsel %vm344, %v330, 0
        %v349 = vsel %vm344, %v331, 0
        %351 = vmatprep.subr.bf16.mxu0 0
        %352 = vmatpush1.bf16.msra.mxu0 %v340
        %353 = vmatprep.subr.bf16.mxu0 0
        %354 = vmatpush1.bf16.msra.mxu0 %v341
        %355 = vmatprep.subr.bf16.mxu0 0
        %356 = vmatpush1.bf16.msra.mxu0 0
        %357 = vmatprep.subr.bf16.mxu0 0
        %358 = vmatpush1.bf16.msra.mxu0 0
        %359 = vmatprep.subr.bf16.mxu0 0
        %360 = vmatpush1.bf16.msra.mxu0 0
        %361 = vmatprep.subr.bf16.mxu0 0
        %362 = vmatpush1.bf16.msra.mxu0 0
        %363 = vmatprep.subr.bf16.mxu0 0
        %364 = vmatpush1.bf16.msra.mxu0 0
        %365 = vmatprep.subr.bf16.mxu0 0
        %366 = vmatpush1.bf16.msra.mxu0 0
        %367 = vmatprep.subr.bf16.mxu0 0
        %368 = vmatpush1.bf16.msra.mxu0 0
        %369 = vmatprep.subr.bf16.mxu0 0
        %370 = vmatpush1.bf16.msra.mxu0 0
        %371 = vmatprep.subr.bf16.mxu0 0
        %372 = vmatpush1.bf16.msra.mxu0 0
        %373 = vmatprep.subr.bf16.mxu0 0
        %374 = vmatpush1.bf16.msra.mxu0 0
        %375 = vmatprep.subr.bf16.mxu0 0
        %376 = vmatpush1.bf16.msra.mxu0 0
        %377 = vmatprep.subr.bf16.mxu0 0
        %378 = vmatpush1.bf16.msra.mxu0 0
        %379 = vmatprep.subr.bf16.mxu0 0
        %380 = vmatpush1.bf16.msra.mxu0 0
        %381 = vmatprep.subr.bf16.mxu0 0
        %382 = vmatpush1.bf16.msra.mxu0 0
        %383 = vmatprep.mubr.bf16.mxu0 0
        %384 = vmatmul.mubr.bf16.gmra.mrb[0].mxu0 %v346
        %v385 = vpop.f32.mrb[0].mxu0
        %v386 = vadd.f32 0.0, %v385
        %v387 = vpop.f32.mrb[0].mxu0
        %v388 = vpop.f32.mrb[0].mxu0
        %v389 = vadd.f32 0.0, %v388
        %v390 = vpop.f32.mrb[0].mxu0
        %391 = vmatprep.mubr.bf16.mxu0 0
        %392 = vmatmul.mubr.bf16.gmra.mrb[0].mxu0 %v349
        %v393 = vpop.f32.mrb[0].mxu0
        %v394 = vadd.f32 0.0, %v393
        %v395 = vpop.f32.mrb[0].mxu0
        %v396 = vpop.f32.mrb[0].mxu0
        %v397 = vadd.f32 0.0, %v396
        %v398 = vpop.f32.mrb[0].mxu0
        %399 = vdwg.mxu0
        %v400 = vpack.c.bf16 %v389, %v386
        %v401 = vpack.c.bf16 %v397, %v394
        %v402 = vmul.bf16 %v400, 1045249613
        %v403 = vmul.bf16 %v401, 1045249613
        %v404 = vmax.bf16 %v400, %v402
        %v405 = vmax.bf16 %v401, %v403
        %v406 = vld [vmem:[#allocation5] sm:$0xf]
        %v407 = vld [vmem:[#allocation5 + $0x4] sm:$0xf]
        %v408 = vld [vmem:[#allocation5 + $0x8] sm:$0xf]
        %v409 = vld [vmem:[#allocation5 + $0xc] sm:$0xf]
        %v410 = vld [vmem:[#allocation5 + $0x10] sm:$0xf]
        %v411 = vld [vmem:[#allocation5 + $0x14] sm:$0xf]
        %v412 = vld [vmem:[#allocation5 + $0x18] sm:$0xf]
        %v413 = vld [vmem:[#allocation5 + $0x1c] sm:$0xf]
        %v414 = vld [vmem:[#allocation5 + $0x20] sm:$0xf]
        %v415 = vld [vmem:[#allocation5 + $0x24] sm:$0xf]
        %v416 = vld [vmem:[#allocation5 + $0x28] sm:$0xf]
        %v417 = vld [vmem:[#allocation5 + $0x2c] sm:$0xf]
        %v418 = vld [vmem:[#allocation5 + $0x30] sm:$0xf]
        %v419 = vld [vmem:[#allocation5 + $0x34] sm:$0xf]
        %v420 = vld [vmem:[#allocation5 + $0x38] sm:$0xf]
        %v421 = vld [vmem:[#allocation5 + $0x3c] sm:$0xf]
        %v438 = vunpack.c.l.b16 %v406
        %v439 = vunpack.c.l.b16 %v407
        %v440 = vunpack.c.l.b16 %v408
        %v441 = vunpack.c.l.b16 %v409
        %v442 = vunpack.c.l.b16 %v410
        %v443 = vunpack.c.l.b16 %v411
        %v444 = vunpack.c.l.b16 %v412
        %v445 = vunpack.c.l.b16 %v413
        %v446 = vunpack.c.l.b16 %v414
        %v447 = vunpack.c.l.b16 %v415
        %v448 = vunpack.c.l.b16 %v416
        %v449 = vunpack.c.l.b16 %v417
        %v450 = vunpack.c.l.b16 %v418
        %v451 = vunpack.c.l.b16 %v419
        %v452 = vunpack.c.l.b16 %v420
        %v453 = vunpack.c.l.b16 %v421
        %v454 = vpack.c.b16 %v439, %v438
        %v455 = vpack.c.b16 %v441, %v440
        %v456 = vpack.c.b16 %v443, %v442
        %v457 = vpack.c.b16 %v445, %v444
        %v458 = vpack.c.b16 %v447, %v446
        %v459 = vpack.c.b16 %v449, %v448
        %v460 = vpack.c.b16 %v451, %v450
        %v461 = vpack.c.b16 %v453, %v452
        %470 = vmatprep.subr.bf16.mxu0 0
        %471 = vmatpush1.bf16.msra.mxu0 %v454
        %472 = vmatprep.subr.bf16.mxu0 0
        %473 = vmatpush1.bf16.msra.mxu0 %v455
        %474 = vmatprep.subr.bf16.mxu0 0
        %475 = vmatpush1.bf16.msra.mxu0 %v456
        %476 = vmatprep.subr.bf16.mxu0 0
        %477 = vmatpush1.bf16.msra.mxu0 %v457
        %478 = vmatprep.subr.bf16.mxu0 0
        %479 = vmatpush1.bf16.msra.mxu0 %v458
        %480 = vmatprep.subr.bf16.mxu0 0
        %481 = vmatpush1.bf16.msra.mxu0 %v459
        %482 = vmatprep.subr.bf16.mxu0 0
        %483 = vmatpush1.bf16.msra.mxu0 %v460
        %484 = vmatprep.subr.bf16.mxu0 0
        %485 = vmatpush1.bf16.msra.mxu0 %v461
        %486 = vmatprep.subr.bf16.mxu0 0
        %487 = vmatpush1.bf16.msra.mxu0 0
        %488 = vmatprep.subr.bf16.mxu0 0
        %489 = vmatpush1.bf16.msra.mxu0 0
        %490 = vmatprep.subr.bf16.mxu0 0
        %491 = vmatpush1.bf16.msra.mxu0 0
        %492 = vmatprep.subr.bf16.mxu0 0
        %493 = vmatpush1.bf16.msra.mxu0 0
        %494 = vmatprep.subr.bf16.mxu0 0
        %495 = vmatpush1.bf16.msra.mxu0 0
        %496 = vmatprep.subr.bf16.mxu0 0
        %497 = vmatpush1.bf16.msra.mxu0 0
        %498 = vmatprep.subr.bf16.mxu0 0
        %499 = vmatpush1.bf16.msra.mxu0 0
        %500 = vmatprep.subr.bf16.mxu0 0
        %501 = vmatpush1.bf16.msra.mxu0 0
        %502 = vmatprep.mubr.bf16.mxu0 0
        %503 = vmatmul.mubr.bf16.gmra.mrb[0].mxu0 %v404
        %v504 = vpop.f32.mrb[0].mxu0
        %v505 = vadd.f32 0.0, %v504
        %v506 = vpop.f32.mrb[0].mxu0
        %v507 = vpop.f32.mrb[0].mxu0
        %v508 = vadd.f32 0.0, %v507
        %v509 = vpop.f32.mrb[0].mxu0
        %510 = vmatprep.mubr.bf16.mxu0 0
        %511 = vmatmul.mubr.bf16.gmra.mrb[0].mxu0 %v405
        %v512 = vpop.f32.mrb[0].mxu0
        %v513 = vadd.f32 0.0, %v512
        %v514 = vpop.f32.mrb[0].mxu0
        %v515 = vpop.f32.mrb[0].mxu0
        %v516 = vadd.f32 0.0, %v515
        %v517 = vpop.f32.mrb[0].mxu0
        %518 = vdwg.mxu0
        %v519 = vpack.c.bf16 %v508, %v505
        %v520 = vpack.c.bf16 %v516, %v513
        %v521 = vmul.bf16 %v519, 1045249613
        %v522 = vmul.bf16 %v520, 1045249613
        %v523 = vmax.bf16 %v519, %v521
        %v524 = vmax.bf16 %v520, %v522
        %v525 = vld [vmem:[#allocation7] sm:$0xf]
        %v526 = vld [vmem:[#allocation7 + $0x4] sm:$0xf]
        %v527 = vld [vmem:[#allocation7 + $0x8] sm:$0xf]
        %v528 = vld [vmem:[#allocation7 + $0xc] sm:$0xf]
        %v529 = vld [vmem:[#allocation7 + $0x10] sm:$0xf]
        %v530 = vld [vmem:[#allocation7 + $0x14] sm:$0xf]
        %v531 = vld [vmem:[#allocation7 + $0x18] sm:$0xf]
        %v532 = vld [vmem:[#allocation7 + $0x1c] sm:$0xf]
        %v533 = vld [vmem:[#allocation7 + $0x20] sm:$0xf]
        %v534 = vld [vmem:[#allocation7 + $0x24] sm:$0xf]
        %v535 = vld [vmem:[#allocation7 + $0x28] sm:$0xf]
        %v536 = vld [vmem:[#allocation7 + $0x2c] sm:$0xf]
        %v537 = vld [vmem:[#allocation7 + $0x30] sm:$0xf]
        %v538 = vld [vmem:[#allocation7 + $0x34] sm:$0xf]
        %v539 = vld [vmem:[#allocation7 + $0x38] sm:$0xf]
        %v540 = vld [vmem:[#allocation7 + $0x3c] sm:$0xf]
        %v557 = vunpack.c.l.b16 %v525
        %v558 = vunpack.c.l.b16 %v526
        %v559 = vunpack.c.l.b16 %v527
        %v560 = vunpack.c.l.b16 %v528
        %v561 = vunpack.c.l.b16 %v529
        %v562 = vunpack.c.l.b16 %v530
        %v563 = vunpack.c.l.b16 %v531
        %v564 = vunpack.c.l.b16 %v532
        %v565 = vunpack.c.l.b16 %v533
        %v566 = vunpack.c.l.b16 %v534
        %v567 = vunpack.c.l.b16 %v535
        %v568 = vunpack.c.l.b16 %v536
        %v569 = vunpack.c.l.b16 %v537
        %v570 = vunpack.c.l.b16 %v538
        %v571 = vunpack.c.l.b16 %v539
        %v572 = vunpack.c.l.b16 %v540
        %v573 = vpack.c.b16 %v558, %v557
        %v574 = vpack.c.b16 %v560, %v559
        %v575 = vpack.c.b16 %v562, %v561
        %v576 = vpack.c.b16 %v564, %v563
        %v577 = vpack.c.b16 %v566, %v565
        %v578 = vpack.c.b16 %v568, %v567
        %v579 = vpack.c.b16 %v570, %v569
        %v580 = vpack.c.b16 %v572, %v571
        %589 = vmatprep.subr.bf16.mxu0 0
        %590 = vmatpush1.bf16.msra.mxu0 %v573
        %591 = vmatprep.subr.bf16.mxu0 0
        %592 = vmatpush1.bf16.msra.mxu0 %v574
        %593 = vmatprep.subr.bf16.mxu0 0
        %594 = vmatpush1.bf16.msra.mxu0 %v575
        %595 = vmatprep.subr.bf16.mxu0 0
        %596 = vmatpush1.bf16.msra.mxu0 %v576
        %597 = vmatprep.subr.bf16.mxu0 0
        %598 = vmatpush1.bf16.msra.mxu0 %v577
        %599 = vmatprep.subr.bf16.mxu0 0
        %600 = vmatpush1.bf16.msra.mxu0 %v578
        %601 = vmatprep.subr.bf16.mxu0 0
        %602 = vmatpush1.bf16.msra.mxu0 %v579
        %603 = vmatprep.subr.bf16.mxu0 0
        %604 = vmatpush1.bf16.msra.mxu0 %v580
        %605 = vmatprep.subr.bf16.mxu0 0
        %606 = vmatpush1.bf16.msra.mxu0 0
        %607 = vmatprep.subr.bf16.mxu0 0
        %608 = vmatpush1.bf16.msra.mxu0 0
        %609 = vmatprep.subr.bf16.mxu0 0
        %610 = vmatpush1.bf16.msra.mxu0 0
        %611 = vmatprep.subr.bf16.mxu0 0
        %612 = vmatpush1.bf16.msra.mxu0 0
        %613 = vmatprep.subr.bf16.mxu0 0
        %614 = vmatpush1.bf16.msra.mxu0 0
        %615 = vmatprep.subr.bf16.mxu0 0
        %616 = vmatpush1.bf16.msra.mxu0 0
        %617 = vmatprep.subr.bf16.mxu0 0
        %618 = vmatpush1.bf16.msra.mxu0 0
        %619 = vmatprep.subr.bf16.mxu0 0
        %620 = vmatpush1.bf16.msra.mxu0 0
        %621 = vmatprep.mubr.bf16.mxu0 0
        %622 = vmatmul.mubr.bf16.gmra.mrb[0].mxu0 %v523
        %v623 = vpop.f32.mrb[0].mxu0
        %v624 = vadd.f32 0.0, %v623
        %v625 = vpop.f32.mrb[0].mxu0
        %v626 = vpop.f32.mrb[0].mxu0
        %v627 = vadd.f32 0.0, %v626
        %v628 = vpop.f32.mrb[0].mxu0
        %629 = vmatprep.mubr.bf16.mxu0 0
        %630 = vmatmul.mubr.bf16.gmra.mrb[0].mxu0 %v524
        %v631 = vpop.f32.mrb[0].mxu0
        %v632 = vadd.f32 0.0, %v631
        %v633 = vpop.f32.mrb[0].mxu0
        %v634 = vpop.f32.mrb[0].mxu0
        %v635 = vadd.f32 0.0, %v634
        %v636 = vpop.f32.mrb[0].mxu0
        %637 = vdwg.mxu0
        %v638 = vpack.c.bf16 %v627, %v624
        %v639 = vpack.c.bf16 %v635, %v632
        %v640 = vmul.bf16 %v638, 1045249613
        %v641 = vmul.bf16 %v639, 1045249613
        %v642 = vmax.bf16 %v638, %v640
        %v643 = vmax.bf16 %v639, %v641
        %v644 = vld [vmem:[#allocation8] sm:$0xf]
        %v645 = vld [vmem:[#allocation8 + $0x4] sm:$0xf]
        %v646 = vld [vmem:[#allocation8 + $0x8] sm:$0xf]
        %v647 = vld [vmem:[#allocation8 + $0xc] sm:$0xf]
        %v648 = vld [vmem:[#allocation8 + $0x10] sm:$0xf]
        %v649 = vld [vmem:[#allocation8 + $0x14] sm:$0xf]
        %v650 = vld [vmem:[#allocation8 + $0x18] sm:$0xf]
        %v651 = vld [vmem:[#allocation8 + $0x1c] sm:$0xf]
        %v652 = vld [vmem:[#allocation8 + $0x20] sm:$0xf]
        %v653 = vld [vmem:[#allocation8 + $0x24] sm:$0xf]
        %v654 = vld [vmem:[#allocation8 + $0x28] sm:$0xf]
        %v655 = vld [vmem:[#allocation8 + $0x2c] sm:$0xf]
        %v656 = vld [vmem:[#allocation8 + $0x30] sm:$0xf]
        %v657 = vld [vmem:[#allocation8 + $0x34] sm:$0xf]
        %v658 = vld [vmem:[#allocation8 + $0x38] sm:$0xf]
        %v659 = vld [vmem:[#allocation8 + $0x3c] sm:$0xf]
        %v676 = vunpack.c.l.b16 %v644
        %v677 = vunpack.c.l.b16 %v645
        %v678 = vunpack.c.l.b16 %v646
        %v679 = vunpack.c.l.b16 %v647
        %v680 = vunpack.c.l.b16 %v648
        %v681 = vunpack.c.l.b16 %v649
        %v682 = vunpack.c.l.b16 %v650
        %v683 = vunpack.c.l.b16 %v651
        %v684 = vunpack.c.l.b16 %v652
        %v685 = vunpack.c.l.b16 %v653
        %v686 = vunpack.c.l.b16 %v654
        %v687 = vunpack.c.l.b16 %v655
        %v688 = vunpack.c.l.b16 %v656
        %v689 = vunpack.c.l.b16 %v657
        %v690 = vunpack.c.l.b16 %v658
        %v691 = vunpack.c.l.b16 %v659
        %v692 = vpack.c.b16 %v677, %v676
        %v693 = vpack.c.b16 %v679, %v678
        %v694 = vpack.c.b16 %v681, %v680
        %v695 = vpack.c.b16 %v683, %v682
        %v696 = vpack.c.b16 %v685, %v684
        %v697 = vpack.c.b16 %v687, %v686
        %v698 = vpack.c.b16 %v689, %v688
        %v699 = vpack.c.b16 %v691, %v690
        %708 = vmatprep.subr.bf16.mxu0 0
        %709 = vmatpush1.bf16.msra.mxu0 %v692
        %710 = vmatprep.subr.bf16.mxu0 0
        %711 = vmatpush1.bf16.msra.mxu0 %v693
        %712 = vmatprep.subr.bf16.mxu0 0
        %713 = vmatpush1.bf16.msra.mxu0 %v694
        %714 = vmatprep.subr.bf16.mxu0 0
        %715 = vmatpush1.bf16.msra.mxu0 %v695
        %716 = vmatprep.subr.bf16.mxu0 0
        %717 = vmatpush1.bf16.msra.mxu0 %v696
        %718 = vmatprep.subr.bf16.mxu0 0
        %719 = vmatpush1.bf16.msra.mxu0 %v697
        %720 = vmatprep.subr.bf16.mxu0 0
        %721 = vmatpush1.bf16.msra.mxu0 %v698
        %722 = vmatprep.subr.bf16.mxu0 0
        %723 = vmatpush1.bf16.msra.mxu0 %v699
        %724 = vmatprep.subr.bf16.mxu0 0
        %725 = vmatpush1.bf16.msra.mxu0 0
        %726 = vmatprep.subr.bf16.mxu0 0
        %727 = vmatpush1.bf16.msra.mxu0 0
        %728 = vmatprep.subr.bf16.mxu0 0
        %729 = vmatpush1.bf16.msra.mxu0 0
        %730 = vmatprep.subr.bf16.mxu0 0
        %731 = vmatpush1.bf16.msra.mxu0 0
        %732 = vmatprep.subr.bf16.mxu0 0
        %733 = vmatpush1.bf16.msra.mxu0 0
        %734 = vmatprep.subr.bf16.mxu0 0
        %735 = vmatpush1.bf16.msra.mxu0 0
        %736 = vmatprep.subr.bf16.mxu0 0
        %737 = vmatpush1.bf16.msra.mxu0 0
        %738 = vmatprep.subr.bf16.mxu0 0
        %739 = vmatpush1.bf16.msra.mxu0 0
        %740 = vmatprep.mubr.bf16.mxu0 0
        %741 = vmatmul.mubr.bf16.gmra.mrb[0].mxu0 %v642
        %v742 = vpop.f32.mrb[0].mxu0
        %v743 = vadd.f32 0.0, %v742
        %v744 = vpop.f32.mrb[0].mxu0
        %v745 = vpop.f32.mrb[0].mxu0
        %v746 = vadd.f32 0.0, %v745
        %v747 = vpop.f32.mrb[0].mxu0
        %748 = vmatprep.mubr.bf16.mxu0 0
        %749 = vmatmul.mubr.bf16.gmra.mrb[0].mxu0 %v643
        %v750 = vpop.f32.mrb[0].mxu0
        %v751 = vadd.f32 0.0, %v750
        %v752 = vpop.f32.mrb[0].mxu0
        %v753 = vpop.f32.mrb[0].mxu0
        %v754 = vadd.f32 0.0, %v753
        %v755 = vpop.f32.mrb[0].mxu0
        %756 = vdwg.mxu0
        %v757 = vpack.c.bf16 %v746, %v743
        %v758 = vpack.c.bf16 %v754, %v751
        %v759 = vmul.bf16 %v757, 1045249613
        %v760 = vmul.bf16 %v758, 1045249613
        %v761 = vmax.bf16 %v757, %v759
        %v762 = vmax.bf16 %v758, %v760
        %v763 = vld [vmem:[%s5] sm:$0xf]
        %v764 = vld [vmem:[%s5 + $0x4] sm:$0xf]
        %v765 = vld [vmem:[%s5 + $0x8] sm:$0xf]
        %v766 = vld [vmem:[%s5 + $0xc] sm:$0xf]
        %v767 = vld [vmem:[%s5 + $0x10] sm:$0xf]
        %v768 = vld [vmem:[%s5 + $0x14] sm:$0xf]
        %v769 = vld [vmem:[%s5 + $0x18] sm:$0xf]
        %v770 = vld [vmem:[%s5 + $0x1c] sm:$0xf]
        %v771 = vld [vmem:[%s5 + $0x20] sm:$0xf]
        %v772 = vld [vmem:[%s5 + $0x24] sm:$0xf]
        %v773 = vld [vmem:[%s5 + $0x28] sm:$0xf]
        %v774 = vld [vmem:[%s5 + $0x2c] sm:$0xf]
        %v775 = vld [vmem:[%s5 + $0x30] sm:$0xf]
        %v776 = vld [vmem:[%s5 + $0x34] sm:$0xf]
        %v777 = vld [vmem:[%s5 + $0x38] sm:$0xf]
        %v778 = vld [vmem:[%s5 + $0x3c] sm:$0xf]
        %v795 = vunpack.c.l.b16 %v763
        %v796 = vunpack.c.l.b16 %v764
        %v797 = vunpack.c.l.b16 %v765
        %v798 = vunpack.c.l.b16 %v766
        %v799 = vunpack.c.l.b16 %v767
        %v800 = vunpack.c.l.b16 %v768
        %v801 = vunpack.c.l.b16 %v769
        %v802 = vunpack.c.l.b16 %v770
        %v803 = vunpack.c.l.b16 %v771
        %v804 = vunpack.c.l.b16 %v772
        %v805 = vunpack.c.l.b16 %v773
        %v806 = vunpack.c.l.b16 %v774
        %v807 = vunpack.c.l.b16 %v775
        %v808 = vunpack.c.l.b16 %v776
        %v809 = vunpack.c.l.b16 %v777
        %v810 = vunpack.c.l.b16 %v778
        %v811 = vpack.c.b16 %v796, %v795
        %v812 = vpack.c.b16 %v798, %v797
        %v813 = vpack.c.b16 %v800, %v799
        %v814 = vpack.c.b16 %v802, %v801
        %v815 = vpack.c.b16 %v804, %v803
        %v816 = vpack.c.b16 %v806, %v805
        %v817 = vpack.c.b16 %v808, %v807
        %v818 = vpack.c.b16 %v810, %v809
        %827 = vmatprep.subr.bf16.mxu0 0
        %828 = vmatpush1.bf16.msra.mxu0 %v811
        %829 = vmatprep.subr.bf16.mxu0 0
        %830 = vmatpush1.bf16.msra.mxu0 %v812
        %831 = vmatprep.subr.bf16.mxu0 0
        %832 = vmatpush1.bf16.msra.mxu0 %v813
        %833 = vmatprep.subr.bf16.mxu0 0
        %834 = vmatpush1.bf16.msra.mxu0 %v814
        %835 = vmatprep.subr.bf16.mxu0 0
        %836 = vmatpush1.bf16.msra.mxu0 %v815
        %837 = vmatprep.subr.bf16.mxu0 0
        %838 = vmatpush1.bf16.msra.mxu0 %v816
        %839 = vmatprep.subr.bf16.mxu0 0
        %840 = vmatpush1.bf16.msra.mxu0 %v817
        %841 = vmatprep.subr.bf16.mxu0 0
        %842 = vmatpush1.bf16.msra.mxu0 %v818
        %843 = vmatprep.subr.bf16.mxu0 0
        %844 = vmatpush1.bf16.msra.mxu0 0
        %845 = vmatprep.subr.bf16.mxu0 0
        %846 = vmatpush1.bf16.msra.mxu0 0
        %847 = vmatprep.subr.bf16.mxu0 0
        %848 = vmatpush1.bf16.msra.mxu0 0
        %849 = vmatprep.subr.bf16.mxu0 0
        %850 = vmatpush1.bf16.msra.mxu0 0
        %851 = vmatprep.subr.bf16.mxu0 0
        %852 = vmatpush1.bf16.msra.mxu0 0
        %853 = vmatprep.subr.bf16.mxu0 0
        %854 = vmatpush1.bf16.msra.mxu0 0
        %855 = vmatprep.subr.bf16.mxu0 0
        %856 = vmatpush1.bf16.msra.mxu0 0
        %857 = vmatprep.subr.bf16.mxu0 0
        %858 = vmatpush1.bf16.msra.mxu0 0
        %859 = vmatprep.mubr.bf16.mxu0 0
        %860 = vmatmul.mubr.bf16.gmra.mrb[0].mxu0 %v761
        %v861 = vpop.f32.mrb[0].mxu0
        %v862 = vadd.f32 0.0, %v861
        %v863 = vpop.f32.mrb[0].mxu0
        %v864 = vpop.f32.mrb[0].mxu0
        %v865 = vadd.f32 0.0, %v864
        %v866 = vpop.f32.mrb[0].mxu0
        %867 = vmatprep.mubr.bf16.mxu0 0
        %868 = vmatmul.mubr.bf16.gmra.mrb[0].mxu0 %v762
        %v869 = vpop.f32.mrb[0].mxu0
        %v870 = vadd.f32 0.0, %v869
        %v871 = vpop.f32.mrb[0].mxu0
        %v872 = vpop.f32.mrb[0].mxu0
        %v873 = vadd.f32 0.0, %v872
        %v874 = vpop.f32.mrb[0].mxu0
        %875 = vdwg.mxu0
        %v876 = vsub.f32 0.0, %v862
        %v877 = vsub.f32 0.0, %v865
        %v878 = vsub.f32 0.0, %v870
        %v879 = vsub.f32 0.0, %v873
        %v880 = vmul.f32 %v876, 1.442695
        %v881 = vpow.pop %v880
        %v882 = vmul.f32 %v877, 1.442695
        %v883 = vpow.pop %v882
        %v884 = vmul.f32 %v878, 1.442695
        %v885 = vpow.pop %v884
        %v886 = vmul.f32 %v879, 1.442695
        %v887 = vpow.pop %v886
        %v888 = vadd.f32 %v881, 1.0
        %v889 = vadd.f32 %v883, 1.0
        %v890 = vadd.f32 %v885, 1.0
        %v891 = vadd.f32 %v887, 1.0
        %v892 = vrcp.pop %v888
        %v893 = vrcp.pop %v889
        %v894 = vrcp.pop %v890
        %v895 = vrcp.pop %v891
        %v896 = vmax.f32 %v892, 0.0
        %v897 = vmax.f32 %v893, 0.0
        %v898 = vmax.f32 %v894, 0.0
        %v899 = vmax.f32 %v895, 0.0
        %v900 = vmin.f32 %v896, 1.0
        %v901 = vmin.f32 %v897, 1.0
        %v902 = vmin.f32 %v898, 1.0
        %v903 = vmin.f32 %v899, 1.0
        %v904 = vpack.c.bf16 %v901, %v900
        %v905 = vpack.c.bf16 %v903, %v902
        %v908 = vunpack.c.l.b16 %v904
        %v909 = vunpack.c.h.b16 %v904
        %v910 = vunpack.c.l.b16 %v905
        %v911 = vunpack.c.h.b16 %v905
        %v912 = vpack.c.b16 %v908, %v908
        %v913 = vpack.c.b16 %v909, %v909
        %v914 = vpack.c.b16 %v910, %v910
        %v915 = vpack.c.b16 %v911, %v911
        %920 = vst [vmem:[%s304] sm:$0xf] %v912
        %921 = vst [vmem:[%s304 + $0x4] sm:$0xf] %v913
        %922 = vst [vmem:[%s304 + $0x8] sm:$0xf] %v914
        %923 = vst [vmem:[%s304 + $0xc] sm:$0xf] %v915
        %s924 = sand.u32 %s162, 1
        %s925 = scalar_lea.sflag [#allocation4], %s924
        %s926 = sand.u32 %s162, 1
        %s927 = smul.addr %s926, 16
        %s928 = scalar_lea.vmem [#allocation10], %s927
        // Predicated region
        $region61: #{tpu_custom_call.1} parent=43 // pred_check
          %p929 = pneg %p172
        $region62: #{tpu_custom_call.1} parent=43 // pred_check_branch
          %931 = sbr.rel (%p929) target = $region64
        $region63: #{tpu_custom_call.1} parent=43 // pred_region
          %s932 = smul.u32 4, %s23
          %s934 = ssub.s32 256, 256
          %935 = vsyncadd %s925, %s934
          %s936 = smul.addr %s932, 64
          %s937 = scalar_lea.hbm %s6, %s936
          %s938 = sshll.u32 %s928, 4
          %s939 = int_to_ptr.vmem [resolvable:$true] %s938
          %944 = dma.vmem_to_hbm [thread:$0]  %s939, 256, %s937, %s925, 64, 64, 4
        $region64: #{tpu_custom_call.1} parent=43 // pred_fallthru
          _
      $region44: #{tpu_custom_call.1} parent=5 // pred_fallthru
        _
      %p945 = scmp.le.s32.totalorder 2, %s18
      // Predicated region
      $region65: #{tpu_custom_call.1} parent=5 // pred_check
        %p946 = pneg %p945
      $region66: #{tpu_custom_call.1} parent=5 // pred_check_branch
        %948 = sbr.rel (%p946) target = $region68
      $region67: #{tpu_custom_call.1} parent=5 // pred_region
        %s949 = ssub.s32 %s18, 2
        // Predicated region
        $region69: #{tpu_custom_call.1} parent=67 // pred_check
          %p950 = pneg %p178
        $region70: #{tpu_custom_call.1} parent=67 // pred_check_branch
          %952 = sbr.rel (%p950) target = $region72
        $region71: #{tpu_custom_call.1} parent=67 // pred_region
          %s953 = sand.u32 %s163, 1
          %s954 = scalar_lea.sflag [#allocation4], %s953
          %s955 = sand.u32 %s163, 1
          %s956 = smul.addr %s955, 16
          %s957 = scalar_lea.vmem [#allocation10], %s956
          %958 = dma.done %s954, 256
        $region72: #{tpu_custom_call.1} parent=67 // pred_fallthru
          _
      $region68: #{tpu_custom_call.1} parent=5 // pred_fallthru
        _
    $region6: #{tpu_custom_call.1} parent=1 // loop_footer
      %s22 = sadd.s32 1, %s18
    $region7: #{tpu_custom_call.1} parent=1 // loop_footer_branch
      %17 = sbr.rel target = $region3
    $region8: #{tpu_custom_call.1} parent=1 // loop_exit
      _
    %959 = vsyncpa [#allocation3], 1
    %s960 = scalar_lea.sflag [#allocation3], 1
    %961 = vsyncpa %s960, 1
    %962 = vsyncpa [#allocation6], 1
    %963 = vsyncpa [#allocation9], 1
    %964 = vsyncpa [#allocation4], 1
    %s965 = scalar_lea.sflag [#allocation4], 1
    %966 = vsyncpa %s965, 1

</llo_original>
